<compile_context>
chip_gen: v7x
topology: tpu7x:2x2x1
jax: 0.10.0
libtpu: 0.0.40
codegen_flags: <defaults>
</compile_context>

<pallas_src>
import functools

import jax
import jax.numpy as jnp
from jax.experimental import pallas as pl
from jax.experimental.pallas import tpu as pltpu


def _residual_block_kernel(x_ref, w_ref, b_ref, g_ref, beta_ref, o_ref,
                           *, d_model, eps):
    # x_ref: (tm, D)   w_ref: (D, D)   b/g/beta: (1, D)   o_ref: (tm, D)
    x = x_ref[...]                                   # native dtype (f32 / bf16)

    # layer(x): Linear(d_model, d_model) -- MXU matmul in native dtype,
    # f32 accumulation.
    h = jnp.dot(x, w_ref[...], preferred_element_type=jnp.float32)
    h = h + b_ref[...].astype(jnp.float32)

    # LayerNorm, torch.std semantics (unbiased: divide by D-1), eps added to std.
    # One-pass mean / variance: both row reductions issue without waiting on the
    # centered tensor.
    s1 = jnp.sum(h, axis=-1, keepdims=True)
    s2 = jnp.sum(h * h, axis=-1, keepdims=True)
    mean = s1 * (1.0 / d_model)
    var = (s2 - d_model * mean * mean) * (1.0 / (d_model - 1))
    std = jnp.sqrt(var)
    # Exact reciprocal (approx=True would exceed the 1e-4 test tolerance).
    inv = pl.reciprocal(std + eps, approx=False)     # (tm, 1)

    centered = h - mean
    normed = (g_ref[...].astype(jnp.float32) * (centered * inv)
              + beta_ref[...].astype(jnp.float32))

    # dropout -> identity (inference), then residual add.
    o_ref[...] = (x.astype(jnp.float32) + normed).astype(o_ref.dtype)


def residual_block(x, w, b, gamma, beta, *, eps=1e-6, tm=256):
    """x: (B, S, D). Returns x + LayerNorm(x @ w + b)."""
    B, S, D = x.shape
    N = B * S
    x2 = x.reshape(N, D)
    b2 = b.reshape(1, D)
    g2 = gamma.reshape(1, D)
    beta2 = beta.reshape(1, D)

    # Row tile: big enough to feed the MXU and amortize per-grid-step overhead,
    # aligned to sublane packing (8 rows f32, 16 rows bf16), capped by N.
    align = 16 if x.dtype == jnp.bfloat16 else 8
    n_up = ((N + align - 1) // align) * align
    tm = max(align, (min(tm, n_up) // align) * align)
    n_pad = ((N + tm - 1) // tm) * tm
    if n_pad != N:
        x2 = jnp.pad(x2, ((0, n_pad - N), (0, 0)))

    grid = (n_pad // tm,)

    # VMEM budget: resident weight (x2 for pipelining slack), double-buffered
    # x/out tiles, f32 intermediates, params + slack.  Capped at 64 MiB so the
    # same config also fits a v7x TensorCore.
    x_item = jnp.dtype(x.dtype).itemsize
    w_item = jnp.dtype(w.dtype).itemsize
    vmem_bytes = (2 * D * D * w_item
                  + 2 * 2 * tm * D * x_item
                  + 6 * tm * D * 4
                  + 8 * D * 4
                  + (2 << 20))
    vmem_limit = int(min(max(vmem_bytes, 32 << 20), 64 << 20))
    # TODO(synk): for D >= ~4096 the resident (D, D) weight no longer fits v7x's
    # 64 MiB VMEM -- add a K grid axis ("arbitrary") with an f32 acc scratch.

    kernel = functools.partial(_residual_block_kernel, d_model=D, eps=eps)

    out = pl.pallas_call(
        kernel,
        out_shape=jax.ShapeDtypeStruct((n_pad, D), x.dtype),
        grid_spec=pltpu.PrefetchScalarGridSpec(
            num_scalar_prefetch=0,
            grid=grid,
            in_specs=[
                pl.BlockSpec((tm, D), lambda i: (i, 0)),   # x rows
                pl.BlockSpec((D, D), lambda i: (0, 0)),    # weight (resident)
                pl.BlockSpec((1, D), lambda i: (0, 0)),    # bias
                pl.BlockSpec((1, D), lambda i: (0, 0)),    # gamma
                pl.BlockSpec((1, D), lambda i: (0, 0)),    # beta
            ],
            out_specs=pl.BlockSpec((tm, D), lambda i: (i, 0)),
        ),
        compiler_params=pltpu.CompilerParams(
            dimension_semantics=("parallel",),
            vmem_limit_bytes=vmem_limit,
        ),
    )(x2, w, b2, g2, beta2)

    if n_pad != N:
        out = out[:N]
    return out.reshape(B, S, D)


def _reference(x, w, b, gamma, beta, eps=1e-6):
    h = jnp.einsum("bsd,de->bse", x, w) + b
    mean = h.mean(-1, keepdims=True)
    centered = h - mean
    var = (centered ** 2).sum(-1, keepdims=True) / (h.shape[-1] - 1)
    std = jnp.sqrt(var)
    return x + (gamma * centered / (std + eps) + beta)


if __name__ == "__main__":
    key = jax.random.PRNGKey(0)
    B, S, D = 2, 8, 32                      # batch=2, seq=8, d_model=32
    kx, kw, kb = jax.random.split(key, 3)

    x = jax.random.normal(kx, (B, S, D), dtype=jnp.float32)
    # deterministic synthetic parameters for layer = Linear(D, D)
    w = jax.random.normal(kw, (D, D), dtype=jnp.float32) * (1.0 / jnp.sqrt(D))
    b = jax.random.normal(kb, (D,), dtype=jnp.float32) * 0.01
    gamma = jnp.ones((D,), dtype=jnp.float32)   # LayerNorm init: ones
    beta = jnp.zeros((D,), dtype=jnp.float32)   # LayerNorm init: zeros

    out = residual_block(x, w, b, gamma, beta)
    out = jax.block_until_ready(out)

    ref = _reference(x, w, b, gamma, beta)
    assert out.shape == (B, S, D)
    assert jnp.allclose(out, ref, atol=1e-4, rtol=1e-4), "mismatch vs reference"

    # TODO(synk): dropout is identity here (eval-mode forward); training-mode
    # stochastic dropout would use pltpu.prng_seed / stateful_bernoulli.
    print("KERNEL_OK")
</pallas_src>

<mosaic_0001>
module attributes {stable_mosaic.version = 11 : i64} {
  func.func @_residual_block_kernel(%arg0: i32, %arg1: memref<16x32xf32, #tpu.memory_space<vmem>>, %arg2: memref<32x32xf32, #tpu.memory_space<vmem>>, %arg3: memref<1x32xf32, #tpu.memory_space<vmem>>, %arg4: memref<1x32xf32, #tpu.memory_space<vmem>>, %arg5: memref<1x32xf32, #tpu.memory_space<vmem>>, %arg6: memref<16x32xf32, #tpu.memory_space<vmem>>) attributes {dimension_semantics = [#tpu.dimension_semantics<parallel>], iteration_bounds = array<i64: 1>, scalar_prefetch = 0 : i64, scratch_operands = 0 : i64, tpu.core_type = #tpu.core_type<tc>, window_params = [{transform_indices = @transform_0, window_bounds = array<i64: 16, 32>}, {pipeline_mode = #tpu.pipeline_mode<synchronous>, transform_indices = @transform_1, window_bounds = array<i64: 32, 32>}, {pipeline_mode = #tpu.pipeline_mode<synchronous>, transform_indices = @transform_2, window_bounds = array<i64: 1, 32>}, {pipeline_mode = #tpu.pipeline_mode<synchronous>, transform_indices = @transform_3, window_bounds = array<i64: 1, 32>}, {pipeline_mode = #tpu.pipeline_mode<synchronous>, transform_indices = @transform_4, window_bounds = array<i64: 1, 32>}, {transform_indices = @transform_5, window_bounds = array<i64: 16, 32>}]} {
    %c0 = arith.constant 0 : index
    %c0_0 = arith.constant 0 : index
    %0 = vector.load %arg1[%c0, %c0_0] : memref<16x32xf32, #tpu.memory_space<vmem>>, vector<16x32xf32>
    %c0_1 = arith.constant 0 : index
    %c0_2 = arith.constant 0 : index
    %1 = vector.load %arg2[%c0_1, %c0_2] : memref<32x32xf32, #tpu.memory_space<vmem>>, vector<32x32xf32>
    %cst = arith.constant dense<0.000000e+00> : vector<16x32xf32>
    %2 = tpu.matmul %0, %1, %cst {dimension_numbers = #tpu.dot_dimension_numbers<[1], [0], [0], [1], [0, 0, 1, 1], [], []>} : vector<16x32xf32>, vector<32x32xf32>, vector<16x32xf32> -> vector<16x32xf32>
    %c0_3 = arith.constant 0 : index
    %c0_4 = arith.constant 0 : index
    %3 = vector.load %arg3[%c0_3, %c0_4] : memref<1x32xf32, #tpu.memory_space<vmem>>, vector<1x32xf32>
    %4 = vector.broadcast %3 : vector<1x32xf32> to vector<16x32xf32>
    %5 = arith.addf %2, %4 : vector<16x32xf32>
    %cst_5 = arith.constant dense<0.000000e+00> : vector<16xf32>
    %6 = vector.multi_reduction <add>, %5, %cst_5 [1] : vector<16x32xf32> to vector<16xf32>
    %7 = vector.shape_cast %6 : vector<16xf32> to vector<16x1xf32>
    %8 = arith.mulf %5, %5 : vector<16x32xf32>
    %cst_6 = arith.constant dense<0.000000e+00> : vector<16xf32>
    %9 = vector.multi_reduction <add>, %8, %cst_6 [1] : vector<16x32xf32> to vector<16xf32>
    %10 = vector.shape_cast %9 : vector<16xf32> to vector<16x1xf32>
    %cst_7 = arith.constant 3.125000e-02 : f32
    %11 = vector.broadcast %cst_7 : f32 to vector<16x1xf32>
    %12 = arith.mulf %7, %11 : vector<16x1xf32>
    %cst_8 = arith.constant 3.200000e+01 : f32
    %13 = vector.broadcast %cst_8 : f32 to vector<16x1xf32>
    %14 = arith.mulf %13, %12 : vector<16x1xf32>
    %15 = arith.mulf %14, %12 : vector<16x1xf32>
    %16 = arith.subf %10, %15 : vector<16x1xf32>
    %cst_9 = arith.constant 0.0322580636 : f32
    %17 = vector.broadcast %cst_9 : f32 to vector<16x1xf32>
    %18 = arith.mulf %16, %17 : vector<16x1xf32>
    %19 = math.sqrt %18 : vector<16x1xf32>
    %cst_10 = arith.constant 9.99999997E-7 : f32
    %20 = vector.broadcast %cst_10 : f32 to vector<16x1xf32>
    %21 = arith.addf %19, %20 : vector<16x1xf32>
    %22 = tpu.reciprocal %21 : vector<16x1xf32> -> vector<16x1xf32>
    %23 = vector.broadcast %12 : vector<16x1xf32> to vector<16x32xf32>
    %24 = arith.subf %5, %23 : vector<16x32xf32>
    %c0_11 = arith.constant 0 : index
    %c0_12 = arith.constant 0 : index
    %25 = vector.load %arg4[%c0_11, %c0_12] : memref<1x32xf32, #tpu.memory_space<vmem>>, vector<1x32xf32>
    %26 = vector.broadcast %22 : vector<16x1xf32> to vector<16x32xf32>
    %27 = arith.mulf %24, %26 : vector<16x32xf32>
    %28 = vector.broadcast %25 : vector<1x32xf32> to vector<16x32xf32>
    %29 = arith.mulf %28, %27 : vector<16x32xf32>
    %c0_13 = arith.constant 0 : index
    %c0_14 = arith.constant 0 : index
    %30 = vector.load %arg5[%c0_13, %c0_14] : memref<1x32xf32, #tpu.memory_space<vmem>>, vector<1x32xf32>
    %31 = vector.broadcast %30 : vector<1x32xf32> to vector<16x32xf32>
    %32 = arith.addf %29, %31 : vector<16x32xf32>
    %33 = arith.addf %0, %32 : vector<16x32xf32>
    %c0_15 = arith.constant 0 : index
    %c0_16 = arith.constant 0 : index
    %34 = vector.load %arg6[%c0_15, %c0_16] : memref<16x32xf32, #tpu.memory_space<vmem>>, vector<16x32xf32>
    tpu.vector_store %arg6[%c0_15, %c0_16], %33 {strides = array<i32>} : memref<16x32xf32, #tpu.memory_space<vmem>>, vector<16x32xf32>,
    return
  }
  func.func @transform_0(%arg0: i32) -> (i32, i32) {
    %c0_i32 = arith.constant 0 : i32
    %c0_i32_0 = arith.constant 0 : i32
    return %arg0, %c0_i32 : i32, i32
  }
  func.func @transform_1(%arg0: i32) -> (i32, i32) {
    %c0_i32 = arith.constant 0 : i32
    %c0_i32_0 = arith.constant 0 : i32
    %c0_i32_1 = arith.constant 0 : i32
    return %c0_i32, %c0_i32_0 : i32, i32
  }
  func.func @transform_2(%arg0: i32) -> (i32, i32) {
    %c0_i32 = arith.constant 0 : i32
    %c0_i32_0 = arith.constant 0 : i32
    %c0_i32_1 = arith.constant 0 : i32
    return %c0_i32, %c0_i32_0 : i32, i32
  }
  func.func @transform_3(%arg0: i32) -> (i32, i32) {
    %c0_i32 = arith.constant 0 : i32
    %c0_i32_0 = arith.constant 0 : i32
    %c0_i32_1 = arith.constant 0 : i32
    return %c0_i32, %c0_i32_0 : i32, i32
  }
  func.func @transform_4(%arg0: i32) -> (i32, i32) {
    %c0_i32 = arith.constant 0 : i32
    %c0_i32_0 = arith.constant 0 : i32
    %c0_i32_1 = arith.constant 0 : i32
    return %c0_i32, %c0_i32_0 : i32, i32
  }
  func.func @transform_5(%arg0: i32) -> (i32, i32) {
    %c0_i32 = arith.constant 0 : i32
    %c0_i32_0 = arith.constant 0 : i32
    return %arg0, %c0_i32 : i32, i32
  }
}

</mosaic_0001>

<llo_original>
// kernel: tpu_custom_call.1
$region0: #{tpu_custom_call.1}
  #allocation0 [shape = 'u32[]', space=smem, size = 0x4, offset = 0x4, fixed_abs, tag = 'smem constant byte address 0x4 - core index']
  #allocation1 [shape = 'u32[144,128]{1,0:T(1,128)}', space=vmem, size = 0x12000, scoped, tag = 'internal scratch']
  %s0 = inlined_call_operand.hbm [shape: f32[16,32], index: 0, kind: input, shape index: {}]
  %s1 = inlined_call_operand.hbm [shape: f32[32,32], index: 1, kind: input, shape index: {}]
  %s2 = inlined_call_operand.vmem [shape: f32[1,32], index: 2, kind: input, shape index: {}]
  %s3 = inlined_call_operand.vmem [shape: f32[1,32], index: 3, kind: input, shape index: {}]
  %s4 = inlined_call_operand.vmem [shape: f32[1,32], index: 4, kind: input, shape index: {}]
  %s5 = inlined_call_operand.hbm [shape: f32[16,32], index: 5, kind: output, shape index: {}]
  %s6 = sld [smem:[#allocation0]]
  $region38: #{tpu_custom_call.1} parent=0
    _
  %s8 = ssub.s32 1, %s6
  %s9 = scalar_select 0, %s8, %s6
  $region1: #{tpu_custom_call.1} parent=0
    #allocation2 [shape = 'u8[8192]{0}', space=vmem, size = 0x2000, scoped, tag = 'input window, operand 0, single buffered']
    #allocation3 [shape = 's32[1]{0}', space=sflag, size = 0x4, scoped, tag = 'scoped memory for tpu_custom_call.1']
    #allocation4 [shape = 's32[1]{0}', space=sflag, size = 0x4, scoped, tag = 'scoped memory for tpu_custom_call.1']
    #allocation5 [shape = 'u8[16384]{0}', space=vmem, size = 0x4000, scoped, tag = 'input window, operand 1, single buffered']
    #allocation6 [shape = 's32[1]{0}', space=sflag, size = 0x4, scoped, tag = 'scoped memory for tpu_custom_call.1']
    #allocation7 [shape = 'u8[8192]{0}', space=vmem, size = 0x2000, scoped, tag = 'output window, operand 0, single buffered']
    %10 = vsyncpa [#allocation3], 0
    %11 = vsyncpa [#allocation6], 0
    %12 = vsyncpa [#allocation4], 0
    // Predicated region
    $region2: #{tpu_custom_call.1} parent=1 // pred_check
      _
    $region3: #{tpu_custom_call.1} parent=1 // pred_check_branch
      %14 = sbr.rel (0) target = $region5
    $region4: #{tpu_custom_call.1} parent=1 // pred_region
      %s16 = ssub.s32 256, 256
      %17 = vsyncadd [#allocation3], %s16
      %s18 = sshll.u32 [#allocation2], 4
      %s19 = int_to_ptr.vmem [resolvable:$true] %s18
      %24 = dma.hbm_to_vmem [thread:$0]  %s0, 256, %s19, [#allocation3], 128, 128, 8
    $region5: #{tpu_custom_call.1} parent=1 // pred_fallthru
      _
    // Predicated region
    $region6: #{tpu_custom_call.1} parent=1 // pred_check
      _
    $region7: #{tpu_custom_call.1} parent=1 // pred_check_branch
      %26 = sbr.rel (0) target = $region9
    $region8: #{tpu_custom_call.1} parent=1 // pred_region
      %s28 = ssub.s32 512, 512
      %29 = vsyncadd [#allocation6], %s28
      %s30 = sshll.u32 [#allocation5], 4
      %s31 = int_to_ptr.vmem [resolvable:$true] %s30
      %36 = dma.hbm_to_vmem [thread:$0]  %s1, 512, %s31, [#allocation6], 128, 128, 8
    $region9: #{tpu_custom_call.1} parent=1 // pred_fallthru
      _
    // Predicated region
    $region10: #{tpu_custom_call.1} parent=1 // pred_check
      _
    $region11: #{tpu_custom_call.1} parent=1 // pred_check_branch
      %38 = sbr.rel (0) target = $region13
    $region12: #{tpu_custom_call.1} parent=1 // pred_region
      _
    $region13: #{tpu_custom_call.1} parent=1 // pred_fallthru
      _
    // Predicated region
    $region14: #{tpu_custom_call.1} parent=1 // pred_check
      _
    $region15: #{tpu_custom_call.1} parent=1 // pred_check_branch
      %40 = sbr.rel (0) target = $region17
    $region16: #{tpu_custom_call.1} parent=1 // pred_region
      _
    $region17: #{tpu_custom_call.1} parent=1 // pred_fallthru
      _
    // Predicated region
    $region18: #{tpu_custom_call.1} parent=1 // pred_check
      _
    $region19: #{tpu_custom_call.1} parent=1 // pred_check_branch
      %42 = sbr.rel (0) target = $region21
    $region20: #{tpu_custom_call.1} parent=1 // pred_region
      _
    $region21: #{tpu_custom_call.1} parent=1 // pred_fallthru
      _
    // Predicated region
    $region22: #{tpu_custom_call.1} parent=1 // pred_check
      _
    $region23: #{tpu_custom_call.1} parent=1 // pred_check_branch
      %44 = sbr.rel (0) target = $region25
    $region24: #{tpu_custom_call.1} parent=1 // pred_region
      %45 = dma.done [#allocation3], 256
    $region25: #{tpu_custom_call.1} parent=1 // pred_fallthru
      _
    // Predicated region
    $region26: #{tpu_custom_call.1} parent=1 // pred_check
      _
    $region27: #{tpu_custom_call.1} parent=1 // pred_check_branch
      %47 = sbr.rel (0) target = $region29
    $region28: #{tpu_custom_call.1} parent=1 // pred_region
      %48 = dma.done [#allocation6], 512
    $region29: #{tpu_custom_call.1} parent=1 // pred_fallthru
      _
    %v49 = vld [vmem:[#allocation2] sm:$0xff]
    %v50 = vld [vmem:[#allocation2 + $0x8] sm:$0xff]
    %v51 = vld [vmem:[#allocation5] sm:$0xff]
    %v52 = vld [vmem:[#allocation5 + $0x8] sm:$0xff]
    %v53 = vld [vmem:[#allocation5 + $0x10] sm:$0xff]
    %v54 = vld [vmem:[#allocation5 + $0x18] sm:$0xff]
    %v55 = vld [vmem:[%s2] sm:$0x1]
    %v57 = vlaneseq
    %v58 = vshrl.u32 %v57, 7
    %v59 = vsub.s32 0, %v58
    %v60 = vrot.slane %v55, %v59
    %vm62 = vcmask 261120
    %v64 = vsel %vm62, %v49, 0
    %v67 = vsel %vm62, %v50, 0
    %69 = vmatprep.subr.mxu0 0.0
    %70 = vmatpush1.msra.mxu0 %v51
    %71 = vmatprep.subr.mxu0 0.0
    %72 = vmatpush1.msra.mxu0 %v52
    %73 = vmatprep.subr.mxu0 0.0
    %74 = vmatpush1.msra.mxu0 %v53
    %75 = vmatprep.subr.mxu0 0.0
    %76 = vmatpush1.msra.mxu0 %v54
    %77 = vmatprep.subr.mxu0 0.0
    %78 = vmatpush1.msra.mxu0 0.0
    %79 = vmatprep.subr.mxu0 0.0
    %80 = vmatpush1.msra.mxu0 0.0
    %81 = vmatprep.subr.mxu0 0.0
    %82 = vmatpush1.msra.mxu0 0.0
    %83 = vmatprep.subr.mxu0 0.0
    %84 = vmatpush1.msra.mxu0 0.0
    %85 = vmatprep.subr.mxu0 0.0
    %86 = vmatpush1.msra.mxu0 0.0
    %87 = vmatprep.subr.mxu0 0.0
    %88 = vmatpush1.msra.mxu0 0.0
    %89 = vmatprep.subr.mxu0 0.0
    %90 = vmatpush1.msra.mxu0 0.0
    %91 = vmatprep.subr.mxu0 0.0
    %92 = vmatpush1.msra.mxu0 0.0
    %93 = vmatprep.subr.mxu0 0.0
    %94 = vmatpush1.msra.mxu0 0.0
    %95 = vmatprep.subr.mxu0 0.0
    %96 = vmatpush1.msra.mxu0 0.0
    %97 = vmatprep.subr.mxu0 0.0
    %98 = vmatpush1.msra.mxu0 0.0
    %99 = vmatprep.subr.mxu0 0.0
    %100 = vmatpush1.msra.mxu0 0.0
    %101 = vmatprep.subr.mxu0 0.0
    %102 = vmatpush1.msra.mxu0 0.0
    %103 = vmatprep.subr.mxu0 0.0
    %104 = vmatpush1.msra.mxu0 0.0
    %105 = vmatprep.subr.mxu0 0.0
    %106 = vmatpush1.msra.mxu0 0.0
    %107 = vmatprep.subr.mxu0 0.0
    %108 = vmatpush1.msra.mxu0 0.0
    %109 = vmatprep.subr.mxu0 0.0
    %110 = vmatpush1.msra.mxu0 0.0
    %111 = vmatprep.subr.mxu0 0.0
    %112 = vmatpush1.msra.mxu0 0.0
    %113 = vmatprep.subr.mxu0 0.0
    %114 = vmatpush1.msra.mxu0 0.0
    %115 = vmatprep.subr.mxu0 0.0
    %116 = vmatpush1.msra.mxu0 0.0
    %117 = vmatprep.subr.mxu0 0.0
    %118 = vmatpush1.msra.mxu0 0.0
    %119 = vmatprep.subr.mxu0 0.0
    %120 = vmatpush1.msra.mxu0 0.0
    %121 = vmatprep.subr.mxu0 0.0
    %122 = vmatpush1.msra.mxu0 0.0
    %123 = vmatprep.subr.mxu0 0.0
    %124 = vmatpush1.msra.mxu0 0.0
    %125 = vmatprep.subr.mxu0 0.0
    %126 = vmatpush1.msra.mxu0 0.0
    %127 = vmatprep.subr.mxu0 0.0
    %128 = vmatpush1.msra.mxu0 0.0
    %129 = vmatprep.subr.mxu0 0.0
    %130 = vmatpush1.msra.mxu0 0.0
    %131 = vmatprep.subr.mxu0 0.0
    %132 = vmatpush1.msra.mxu0 0.0
    %133 = vmatprep.mubr.f32.mxu0 0.0
    %134 = vmatmul.mubr.f32.gmra.mrb[0].mxu0 %v64
    %v135 = vpop.f32.mrb[0].mxu0
    %v136 = vadd.f32 %v60, %v135
    %v137 = vpop.f32.mrb[0].mxu0
    %138 = vmatprep.mubr.f32.mxu0 0.0
    %139 = vmatmul.mubr.f32.gmra.mrb[0].mxu0 %v67
    %v140 = vpop.f32.mrb[0].mxu0
    %v141 = vadd.f32 %v60, %v140
    %v142 = vpop.f32.mrb[0].mxu0
    %143 = vdwg.mxu0
    %v144 = vsel %vm62, %v136, 0.0
    %145 = vadd.xlane.f32.xlu0 %v144
    %v146 = vpop.xlane.xlu0 %145
    %v147 = vsel %vm62, %v141, 0.0
    %148 = vadd.xlane.f32.xlu0 %v147
    %v149 = vpop.xlane.xlu0 %148
    %v150 = vmul.f32 %v136, %v136
    %v151 = vmul.f32 %v141, %v141
    %v152 = vsel %vm62, %v150, 0.0
    %153 = vadd.xlane.f32.xlu0 %v152
    %v154 = vpop.xlane.xlu0 %153
    %v155 = vsel %vm62, %v151, 0.0
    %156 = vadd.xlane.f32.xlu0 %v155
    %v157 = vpop.xlane.xlu0 %156
    %v158 = vmul.f32 %v146, 0.03125
    %v159 = vmul.f32 %v149, 0.03125
    %v160 = vmul.f32 %v158, 32.0
    %v161 = vmul.f32 %v159, 32.0
    %v162 = vmul.f32 %v160, %v158
    %v163 = vmul.f32 %v161, %v159
    %v164 = vsub.f32 %v154, %v162
    %v165 = vsub.f32 %v157, %v163
    %v166 = vmul.f32 %v164, 0.032258064
    %v167 = vmul.f32 %v165, 0.032258064
    %v168 = vrsqrt.pop %v166
    %v169 = vmul.f32 %v166, %v168
    %vm170 = vcmp.eq.f32.partialorder %v166, inf
    %v171 = vsel %vm170, %v166, %v169
    %vm172 = vcmp.eq.f32.partialorder %v166, 0.0
    %v173 = vand.u32 %v166, 2147483648
    %v174 = vsel %vm172, %v173, %v171
    %v175 = vrsqrt.pop %v167
    %v176 = vmul.f32 %v167, %v175
    %vm177 = vcmp.eq.f32.partialorder %v167, inf
    %v178 = vsel %vm177, %v167, %v176
    %vm179 = vcmp.eq.f32.partialorder %v167, 0.0
    %v180 = vand.u32 %v167, 2147483648
    %v181 = vsel %vm179, %v180, %v178
    %v182 = vadd.f32 %v174, 1e-06
    %v183 = vadd.f32 %v181, 1e-06
    %v184 = vrcp.pop %v182
    %v185 = vrcp.pop %v183
    %v186 = vsub.f32 %v136, %v158
    %v187 = vsub.f32 %v141, %v159
    %v188 = vld [vmem:[%s3] sm:$0x1]
    %v189 = vmul.f32 %v186, %v184
    %v190 = vmul.f32 %v187, %v185
    %v192 = vlaneseq
    %v193 = vshrl.u32 %v192, 7
    %v194 = vsub.s32 0, %v193
    %v195 = vrot.slane %v188, %v194
    %v197 = vmul.f32 %v195, %v189
    %v198 = vmul.f32 %v195, %v190
    %v199 = vld [vmem:[%s4] sm:$0x1]
    %v201 = vlaneseq
    %v202 = vshrl.u32 %v201, 7
    %v203 = vsub.s32 0, %v202
    %v204 = vrot.slane %v199, %v203
    %v206 = vadd.f32 %v197, %v204
    %v207 = vadd.f32 %v198, %v204
    %v208 = vadd.f32 %v49, %v206
    %v209 = vadd.f32 %v50, %v207
    %210 = vst.msk [vmem:[#allocation7] sm:$0xff] %vm62, %v208
    %211 = vst.msk [vmem:[#allocation7 + $0x8] sm:$0xff] %vm62, %v209
    // Predicated region
    $region30: #{tpu_custom_call.1} parent=1 // pred_check
      _
    $region31: #{tpu_custom_call.1} parent=1 // pred_check_branch
      %213 = sbr.rel (0) target = $region33
    $region32: #{tpu_custom_call.1} parent=1 // pred_region
      %s215 = ssub.s32 256, 256
      %216 = vsyncadd [#allocation4], %s215
      %s217 = sshll.u32 [#allocation7], 4
      %s218 = int_to_ptr.vmem [resolvable:$true] %s217
      %223 = dma.vmem_to_hbm [thread:$0]  %s218, 256, %s5, [#allocation4], 128, 128, 8
    $region33: #{tpu_custom_call.1} parent=1 // pred_fallthru
      _
    // Predicated region
    $region34: #{tpu_custom_call.1} parent=1 // pred_check
      _
    $region35: #{tpu_custom_call.1} parent=1 // pred_check_branch
      %225 = sbr.rel (0) target = $region37
    $region36: #{tpu_custom_call.1} parent=1 // pred_region
      %226 = dma.done [#allocation4], 256
    $region37: #{tpu_custom_call.1} parent=1 // pred_fallthru
      _
    %227 = vsyncpa [#allocation3], 1
    %228 = vsyncpa [#allocation6], 1
    %229 = vsyncpa [#allocation4], 1

</llo_original>
